<compile_context>
chip_gen: v7x
topology: tpu7x:2x2x1
jax: 0.10.0
libtpu: 0.0.40
codegen_flags: <defaults>
</compile_context>

<pallas_src>
import functools

import jax
import jax.numpy as jnp
from jax.experimental import pallas as pl
from jax.experimental.pallas import tpu as pltpu


def _round_up(x: int, m: int) -> int:
    return (x + m - 1) // m * m


def _cdiv(a: int, b: int) -> int:
    return (a + b - 1) // b


def _largest_aligned_divisor(dim: int, align: int, cap: int) -> int:
    """Largest divisor of `dim` that is a multiple of `align` and <= cap (>= align)."""
    d = (min(cap, dim) // align) * align
    while d >= align:
        if dim % d == 0:
            return d
        d -= align
    return align


def _linear_kernel(x_ref, w_ref, b_ref, o_ref):
    """One (tm, tn) output tile; K is the innermost ('arbitrary') grid axis.

    The output block index is constant across K, so o_ref stays resident in VMEM
    and acts as the f32 accumulator (no separate scratch needed).
    """
    k = pl.program_id(2)

    @pl.when(k == 0)
    def _init():
        o_ref[...] = jnp.zeros_like(o_ref)

    o_ref[...] += jnp.dot(
        x_ref[...], w_ref[...], preferred_element_type=jnp.float32
    )

    # Bias add hoisted out of the K loop: one VPU pass per output tile.
    @pl.when(k == pl.num_programs(2) - 1)
    def _finalize():
        o_ref[...] += b_ref[...].astype(o_ref.dtype)


@functools.partial(
    jax.jit, static_argnames=("block_m", "block_n", "block_k", "use_bf16_operands")
)
def linear_forward(
    x,
    weight,
    bias,
    *,
    block_m: int = 512,
    block_n: int = 512,
    block_k: int = 1024,
    use_bf16_operands: bool = False,
):
    """y = x @ weight + bias, computed in a tiled Pallas TPU kernel.

    x:      (n, dim_in)       float32
    weight: (dim_in, dim_out) float32
    bias:   (1, dim_out)      float32
    returns (n, dim_out)      float32
    """
    n, dim_in = x.shape
    dim_out = weight.shape[1]

    # Pad only to the (8, 128) hardware minimum (thin strips; zero copies when the
    # dims are already aligned). K MUST be padded exactly so the reduction never
    # reads out-of-bounds garbage; M/N ragged final blocks only touch masked output.
    m_pad = _round_up(n, 8)
    k_pad = _round_up(dim_in, 128)
    n_pad = _round_up(dim_out, 128)

    # Balanced tiles: one block when the padded dim fits, else ~equal 8/128-aligned
    # blocks (final block may be ragged -> masked writes, negligible waste).
    nb_m = _cdiv(m_pad, block_m)
    tm = _round_up(_cdiv(m_pad, nb_m), 8)
    nb_n = _cdiv(n_pad, block_n)
    tn = _round_up(_cdiv(n_pad, nb_n), 128)
    # K tiles must divide k_pad exactly (no ragged reduction blocks).
    tk = k_pad if k_pad <= block_k else _largest_aligned_divisor(k_pad, 128, block_k)

    # v7x has two TensorCores: if the whole problem is a single (M, N) block, split
    # one parallel axis into >=2 exact blocks so the second core isn't idle.
    if _cdiv(m_pad, tm) == 1 and _cdiv(n_pad, tn) == 1:
        if n_pad >= 256:
            tn = _largest_aligned_divisor(n_pad, 128, max(n_pad // 2, 128))
        elif m_pad >= 16:
            tm = _largest_aligned_divisor(m_pad, 8, max(m_pad // 2, 8))

    grid_m = _cdiv(m_pad, tm)
    grid_n = _cdiv(n_pad, tn)
    grid_k = k_pad // tk
    grid = (grid_m, grid_n, grid_k)

    # Thin zero pads (exact for x @ W); skipped entirely when already aligned.
    x_p = x if (m_pad, k_pad) == (n, dim_in) else jnp.pad(
        x, ((0, m_pad - n), (0, k_pad - dim_in)))
    w_p = weight if (k_pad, n_pad) == (dim_in, dim_out) else jnp.pad(
        weight, ((0, k_pad - dim_in), (0, n_pad - dim_out)))
    b_p = bias if n_pad == dim_out else jnp.pad(
        bias, ((0, 0), (0, n_pad - dim_out)))

    if use_bf16_operands:
        # v6e/v7x MXU peak path: bf16 operands, f32 accumulate, f32 bias/output.
        # (Changes numerics vs the f32 PyTorch module -> opt-in only.)
        x_p = x_p.astype(jnp.bfloat16)
        w_p = w_p.astype(jnp.bfloat16)

    in_bytes = 2 if use_bf16_operands else 4

    # VMEM footprint of the pipeline (double-buffered inputs + resident f32 output).
    vmem_need = (
        2 * tm * tk * in_bytes
        + 2 * tk * tn * in_bytes
        + 2 * tn * 4
        + 2 * tm * tn * 4
    )
    vmem_limit = int(min(max(2 * vmem_need, 32 * 1024 * 1024), 64 * 1024 * 1024))

    # Honest HBM traffic: x is re-read once per N block, weight once per M block.
    cost = pl.CostEstimate(
        flops=2 * m_pad * k_pad * n_pad,
        transcendentals=0,
        bytes_accessed=int(
            in_bytes * m_pad * k_pad * grid_n      # x stream (re-read per N block)
            + in_bytes * k_pad * n_pad * grid_m    # weight stream (re-read per M block)
            + 4 * n_pad * grid_m                   # bias (re-read per M block)
            + 4 * m_pad * n_pad                    # output written once
        ),
    )

    out = pl.pallas_call(
        _linear_kernel,
        out_shape=jax.ShapeDtypeStruct((m_pad, n_pad), jnp.float32),
        grid_spec=pltpu.PrefetchScalarGridSpec(
            num_scalar_prefetch=0,
            grid=grid,
            in_specs=[
                pl.BlockSpec((tm, tk), lambda i, j, k: (i, k)),  # x tile
                pl.BlockSpec((tk, tn), lambda i, j, k: (k, j)),  # weight tile
                pl.BlockSpec((1, tn), lambda i, j, k: (0, j)),   # bias tile
            ],
            out_specs=pl.BlockSpec((tm, tn), lambda i, j, k: (i, j)),
        ),
        compiler_params=pltpu.CompilerParams(
            dimension_semantics=("parallel", "parallel", "arbitrary"),
            vmem_limit_bytes=vmem_limit,
        ),
        cost_estimate=cost,
    )(x_p, w_p, b_p)

    if (m_pad, n_pad) != (n, dim_out):
        out = out[:n, :dim_out]
    return out


if __name__ == "__main__":
    # Module dims: dim_in=32, dim_out=16; batch n=8 (small, consistent with forward).
    n, dim_in, dim_out = 8, 32, 16

    key = jax.random.PRNGKey(0)
    k_x, k_w, k_b = jax.random.split(key, 3)

    x = jax.random.normal(k_x, (n, dim_in), dtype=jnp.float32)
    weight = jax.random.normal(k_w, (dim_in, dim_out), dtype=jnp.float32)  # torch.randn((dim_in, dim_out))
    bias = jax.random.normal(k_b, (1, dim_out), dtype=jnp.float32)         # torch.randn((1, dim_out))

    y = linear_forward(x, weight, bias)
    jax.block_until_ready(y)

    y_ref = jnp.dot(x, weight, precision=jax.lax.Precision.HIGHEST) + bias
    assert y.shape == (n, dim_out)
    assert jnp.allclose(y, y_ref, atol=1e-3, rtol=1e-3), "mismatch vs reference"

    # Also exercise a ragged, multi-block shape to verify the thin-pad/tiling path.
    n2, di2, do2 = 300, 640, 272
    k1, k2, k3 = jax.random.split(jax.random.PRNGKey(1), 3)
    x2 = jax.random.normal(k1, (n2, di2), dtype=jnp.float32)
    w2 = jax.random.normal(k2, (di2, do2), dtype=jnp.float32)
    b2 = jax.random.normal(k3, (1, do2), dtype=jnp.float32)
    y2 = linear_forward(x2, w2, b2)
    jax.block_until_ready(y2)
    y2_ref = jnp.dot(x2, w2, precision=jax.lax.Precision.HIGHEST) + b2
    assert y2.shape == (n2, do2)
    assert jnp.allclose(y2, y2_ref, atol=1e-1, rtol=1e-2), "mismatch (tiled path)"

    print("KERNEL_OK")
</pallas_src>

<mosaic_0001>
module attributes {stable_mosaic.version = 11 : i64} {
  func.func @_linear_kernel(%arg0: i32, %arg1: i32, %arg2: i32, %arg3: memref<8x128xf32, #tpu.memory_space<vmem>>, %arg4: memref<128x128xf32, #tpu.memory_space<vmem>>, %arg5: memref<1x128xf32, #tpu.memory_space<vmem>>, %arg6: memref<8x128xf32, #tpu.memory_space<vmem>>) attributes {dimension_semantics = [#tpu.dimension_semantics<parallel>, #tpu.dimension_semantics<parallel>, #tpu.dimension_semantics<arbitrary>], iteration_bounds = array<i64: 1, 1, 1>, scalar_prefetch = 0 : i64, scratch_operands = 0 : i64, tpu.core_type = #tpu.core_type<tc>, window_params = [{transform_indices = @transform_0, window_bounds = array<i64: 8, 128>}, {transform_indices = @transform_1, window_bounds = array<i64: 128, 128>}, {transform_indices = @transform_2, window_bounds = array<i64: 1, 128>}, {transform_indices = @transform_3, window_bounds = array<i64: 8, 128>}]} {
    %c0_i32 = arith.constant 0 : i32
    %0 = arith.cmpi eq, %arg2, %c0_i32 : i32
    %1 = arith.extui %0 : i1 to i32
    %c0_i32_0 = arith.constant 0 : i32
    %2 = arith.cmpi ne, %1, %c0_i32_0 : i32
    scf.if %2 {
      %cst_10 = arith.constant 0.000000e+00 : f32
      %12 = vector.broadcast %cst_10 : f32 to vector<8x128xf32>
      %c0_11 = arith.constant 0 : index
      %c0_12 = arith.constant 0 : index
      %13 = vector.load %arg6[%c0_11, %c0_12] : memref<8x128xf32, #tpu.memory_space<vmem>>, vector<8x128xf32>
      tpu.vector_store %arg6[%c0_11, %c0_12], %12 {strides = array<i32>} : memref<8x128xf32, #tpu.memory_space<vmem>>, vector<8x128xf32>,
    } else {
    }
    %c0 = arith.constant 0 : index
    %c0_1 = arith.constant 0 : index
    %3 = vector.load %arg6[%c0, %c0_1] : memref<8x128xf32, #tpu.memory_space<vmem>>, vector<8x128xf32>
    %c0_2 = arith.constant 0 : index
    %c0_3 = arith.constant 0 : index
    %4 = vector.load %arg3[%c0_2, %c0_3] : memref<8x128xf32, #tpu.memory_space<vmem>>, vector<8x128xf32>
    %c0_4 = arith.constant 0 : index
    %c0_5 = arith.constant 0 : index
    %5 = vector.load %arg4[%c0_4, %c0_5] : memref<128x128xf32, #tpu.memory_space<vmem>>, vector<128x128xf32>
    %cst = arith.constant dense<0.000000e+00> : vector<8x128xf32>
    %6 = tpu.matmul %4, %5, %cst {dimension_numbers = #tpu.dot_dimension_numbers<[1], [0], [0], [1], [0, 0, 1, 1], [], []>} : vector<8x128xf32>, vector<128x128xf32>, vector<8x128xf32> -> vector<8x128xf32>
    %7 = arith.addf %3, %6 : vector<8x128xf32>
    %c0_6 = arith.constant 0 : index
    %c0_7 = arith.constant 0 : index
    %8 = vector.load %arg6[%c0_6, %c0_7] : memref<8x128xf32, #tpu.memory_space<vmem>>, vector<8x128xf32>
    tpu.vector_store %arg6[%c0_6, %c0_7], %7 {strides = array<i32>} : memref<8x128xf32, #tpu.memory_space<vmem>>, vector<8x128xf32>,
    %c0_i32_8 = arith.constant 0 : i32
    %9 = arith.cmpi eq, %arg2, %c0_i32_8 : i32
    %10 = arith.extui %9 : i1 to i32
    %c0_i32_9 = arith.constant 0 : i32
    %11 = arith.cmpi ne, %10, %c0_i32_9 : i32
    scf.if %11 {
      %c0_10 = arith.constant 0 : index
      %c0_11 = arith.constant 0 : index
      %12 = vector.load %arg6[%c0_10, %c0_11] : memref<8x128xf32, #tpu.memory_space<vmem>>, vector<8x128xf32>
      %c0_12 = arith.constant 0 : index
      %c0_13 = arith.constant 0 : index
      %13 = vector.load %arg5[%c0_12, %c0_13] : memref<1x128xf32, #tpu.memory_space<vmem>>, vector<1x128xf32>
      %14 = vector.broadcast %13 : vector<1x128xf32> to vector<8x128xf32>
      %15 = arith.addf %12, %14 : vector<8x128xf32>
      %c0_14 = arith.constant 0 : index
      %c0_15 = arith.constant 0 : index
      %16 = vector.load %arg6[%c0_14, %c0_15] : memref<8x128xf32, #tpu.memory_space<vmem>>, vector<8x128xf32>
      tpu.vector_store %arg6[%c0_14, %c0_15], %15 {strides = array<i32>} : memref<8x128xf32, #tpu.memory_space<vmem>>, vector<8x128xf32>,
    } else {
    }
    return
  }
  func.func @transform_0(%arg0: i32, %arg1: i32, %arg2: i32) -> (i32, i32) {
    %c0_i32 = arith.constant 0 : i32
    return %arg0, %arg2 : i32, i32
  }
  func.func @transform_1(%arg0: i32, %arg1: i32, %arg2: i32) -> (i32, i32) {
    %c0_i32 = arith.constant 0 : i32
    return %arg2, %arg1 : i32, i32
  }
  func.func @transform_2(%arg0: i32, %arg1: i32, %arg2: i32) -> (i32, i32) {
    %c0_i32 = arith.constant 0 : i32
    %c0_i32_0 = arith.constant 0 : i32
    return %c0_i32, %arg1 : i32, i32
  }
  func.func @transform_3(%arg0: i32, %arg1: i32, %arg2: i32) -> (i32, i32) {
    %c0_i32 = arith.constant 0 : i32
    return %arg0, %arg1 : i32, i32
  }
}

</mosaic_0001>

<llo_original>
// kernel: linear_forward.1
$region0: #{linear_forward.1}
  #allocation0 [shape = 'u32[]', space=smem, size = 0x4, offset = 0x4, fixed_abs, tag = 'smem constant byte address 0x4 - core index']
  #allocation1 [shape = 'u32[144,128]{1,0:T(1,128)}', space=vmem, size = 0x12000, scoped, tag = 'internal scratch']
  %s0 = inlined_call_operand.vmem [shape: f32[8,128], index: 0, kind: input, shape index: {}]
  %s1 = inlined_call_operand.vmem [shape: f32[128,128], index: 1, kind: input, shape index: {}]
  %s2 = inlined_call_operand.vmem [shape: f32[1,128], index: 2, kind: input, shape index: {}]
  %s3 = inlined_call_operand.hbm [shape: f32[8,128], index: 3, kind: output, shape index: {}]
  %s4 = sld [smem:[#allocation0]]
  $region30: #{linear_forward.1} parent=0
    _
  %s6 = ssub.s32 1, %s4
  %s7 = scalar_select 0, %s6, %s4
  $region1: #{linear_forward.1} parent=0
    #allocation2 [shape = 'u8[4096]{0}', space=vmem, size = 0x1000, scoped, tag = 'output window, operand 0, single buffered']
    #allocation3 [shape = 's32[1]{0}', space=sflag, size = 0x4, scoped, tag = 'scoped memory for linear_forward.1']
    %8 = vsyncpa [#allocation3], 0
    // Predicated region
    $region2: #{linear_forward.1} parent=1 // pred_check
      _
    $region3: #{linear_forward.1} parent=1 // pred_check_branch
      %10 = sbr.rel (0) target = $region5
    $region4: #{linear_forward.1} parent=1 // pred_region
      _
    $region5: #{linear_forward.1} parent=1 // pred_fallthru
      _
    // Predicated region
    $region6: #{linear_forward.1} parent=1 // pred_check
      _
    $region7: #{linear_forward.1} parent=1 // pred_check_branch
      %12 = sbr.rel (0) target = $region9
    $region8: #{linear_forward.1} parent=1 // pred_region
      _
    $region9: #{linear_forward.1} parent=1 // pred_fallthru
      _
    // Predicated region
    $region10: #{linear_forward.1} parent=1 // pred_check
      _
    $region11: #{linear_forward.1} parent=1 // pred_check_branch
      %14 = sbr.rel (0) target = $region13
    $region12: #{linear_forward.1} parent=1 // pred_region
      _
    $region13: #{linear_forward.1} parent=1 // pred_fallthru
      _
    %p15 = scmp.eq.s32.totalorder 0, 0
    // Predicated region
    $region14: #{linear_forward.1} parent=1 // pred_check
      %p16 = pneg %p15
    $region15: #{linear_forward.1} parent=1 // pred_check_branch
      %18 = sbr.rel (%p16) target = $region17
    $region16: #{linear_forward.1} parent=1 // pred_region
      %19 = vst [vmem:[#allocation2] sm:$0xff] 0.0
    $region17: #{linear_forward.1} parent=1 // pred_fallthru
      _
    %v20 = vld [vmem:[#allocation2] sm:$0xff]
    %v21 = vld [vmem:[%s0] sm:$0xff]
    %v22 = vld [vmem:[%s1] sm:$0xff]
    %v23 = vld [vmem:[%s1 + $0x8] sm:$0xff]
    %v24 = vld [vmem:[%s1 + $0x10] sm:$0xff]
    %v25 = vld [vmem:[%s1 + $0x18] sm:$0xff]
    %v26 = vld [vmem:[%s1 + $0x20] sm:$0xff]
    %v27 = vld [vmem:[%s1 + $0x28] sm:$0xff]
    %v28 = vld [vmem:[%s1 + $0x30] sm:$0xff]
    %v29 = vld [vmem:[%s1 + $0x38] sm:$0xff]
    %v30 = vld [vmem:[%s1 + $0x40] sm:$0xff]
    %v31 = vld [vmem:[%s1 + $0x48] sm:$0xff]
    %v32 = vld [vmem:[%s1 + $0x50] sm:$0xff]
    %v33 = vld [vmem:[%s1 + $0x58] sm:$0xff]
    %v34 = vld [vmem:[%s1 + $0x60] sm:$0xff]
    %v35 = vld [vmem:[%s1 + $0x68] sm:$0xff]
    %v36 = vld [vmem:[%s1 + $0x70] sm:$0xff]
    %v37 = vld [vmem:[%s1 + $0x78] sm:$0xff]
    %38 = vmatprep.subr.mxu0 0.0
    %39 = vmatpush1.msra.mxu0 %v22
    %40 = vmatprep.subr.mxu0 0.0
    %41 = vmatpush1.msra.mxu0 %v23
    %42 = vmatprep.subr.mxu0 0.0
    %43 = vmatpush1.msra.mxu0 %v24
    %44 = vmatprep.subr.mxu0 0.0
    %45 = vmatpush1.msra.mxu0 %v25
    %46 = vmatprep.subr.mxu0 0.0
    %47 = vmatpush1.msra.mxu0 %v26
    %48 = vmatprep.subr.mxu0 0.0
    %49 = vmatpush1.msra.mxu0 %v27
    %50 = vmatprep.subr.mxu0 0.0
    %51 = vmatpush1.msra.mxu0 %v28
    %52 = vmatprep.subr.mxu0 0.0
    %53 = vmatpush1.msra.mxu0 %v29
    %54 = vmatprep.subr.mxu0 0.0
    %55 = vmatpush1.msra.mxu0 %v30
    %56 = vmatprep.subr.mxu0 0.0
    %57 = vmatpush1.msra.mxu0 %v31
    %58 = vmatprep.subr.mxu0 0.0
    %59 = vmatpush1.msra.mxu0 %v32
    %60 = vmatprep.subr.mxu0 0.0
    %61 = vmatpush1.msra.mxu0 %v33
    %62 = vmatprep.subr.mxu0 0.0
    %63 = vmatpush1.msra.mxu0 %v34
    %64 = vmatprep.subr.mxu0 0.0
    %65 = vmatpush1.msra.mxu0 %v35
    %66 = vmatprep.subr.mxu0 0.0
    %67 = vmatpush1.msra.mxu0 %v36
    %68 = vmatprep.subr.mxu0 0.0
    %69 = vmatpush1.msra.mxu0 %v37
    %70 = vmatprep.subr.mxu0 0.0
    %71 = vmatpush1.msra.mxu0 0.0
    %72 = vmatprep.subr.mxu0 0.0
    %73 = vmatpush1.msra.mxu0 0.0
    %74 = vmatprep.subr.mxu0 0.0
    %75 = vmatpush1.msra.mxu0 0.0
    %76 = vmatprep.subr.mxu0 0.0
    %77 = vmatpush1.msra.mxu0 0.0
    %78 = vmatprep.subr.mxu0 0.0
    %79 = vmatpush1.msra.mxu0 0.0
    %80 = vmatprep.subr.mxu0 0.0
    %81 = vmatpush1.msra.mxu0 0.0
    %82 = vmatprep.subr.mxu0 0.0
    %83 = vmatpush1.msra.mxu0 0.0
    %84 = vmatprep.subr.mxu0 0.0
    %85 = vmatpush1.msra.mxu0 0.0
    %86 = vmatprep.subr.mxu0 0.0
    %87 = vmatpush1.msra.mxu0 0.0
    %88 = vmatprep.subr.mxu0 0.0
    %89 = vmatpush1.msra.mxu0 0.0
    %90 = vmatprep.subr.mxu0 0.0
    %91 = vmatpush1.msra.mxu0 0.0
    %92 = vmatprep.subr.mxu0 0.0
    %93 = vmatpush1.msra.mxu0 0.0
    %94 = vmatprep.subr.mxu0 0.0
    %95 = vmatpush1.msra.mxu0 0.0
    %96 = vmatprep.subr.mxu0 0.0
    %97 = vmatpush1.msra.mxu0 0.0
    %98 = vmatprep.subr.mxu0 0.0
    %99 = vmatpush1.msra.mxu0 0.0
    %100 = vmatprep.subr.mxu0 0.0
    %101 = vmatpush1.msra.mxu0 0.0
    %102 = vmatprep.mubr.f32.mxu0 0.0
    %103 = vmatmul.mubr.f32.gmra.mrb[0].mxu0 %v21
    %v104 = vpop.f32.mrb[0].mxu0
    %v105 = vadd.f32 0.0, %v104
    %v106 = vpop.f32.mrb[0].mxu0
    %107 = vdwg.mxu0
    %v108 = vadd.f32 %v20, %v105
    %109 = vst [vmem:[#allocation2] sm:$0xff] %v108
    // Predicated region
    $region18: #{linear_forward.1} parent=1 // pred_check
      %p110 = pneg %p15
    $region19: #{linear_forward.1} parent=1 // pred_check_branch
      %112 = sbr.rel (%p110) target = $region21
    $region20: #{linear_forward.1} parent=1 // pred_region
      %v113 = vld [vmem:[#allocation2] sm:$0xff]
      %v114 = vld [vmem:[%s2] sm:$0x1]
      %v116 = vlaneseq
      %v117 = vshrl.u32 %v116, 7
      %v118 = vsub.s32 0, %v117
      %v119 = vrot.slane %v114, %v118
      %v121 = vadd.f32 %v113, %v119
      %122 = vst [vmem:[#allocation2] sm:$0xff] %v121
    $region21: #{linear_forward.1} parent=1 // pred_fallthru
      _
    // Predicated region
    $region22: #{linear_forward.1} parent=1 // pred_check
      _
    $region23: #{linear_forward.1} parent=1 // pred_check_branch
      %124 = sbr.rel (0) target = $region25
    $region24: #{linear_forward.1} parent=1 // pred_region
      %s126 = ssub.s32 128, 128
      %127 = vsyncadd [#allocation3], %s126
      %s129 = sshll.u32 [#allocation2], 4
      %s130 = int_to_ptr.vmem [resolvable:$true] %s129
      %132 = dma.vmem_to_hbm [thread:$0]  %s130, 128, %s3, [#allocation3]
    $region25: #{linear_forward.1} parent=1 // pred_fallthru
      _
    // Predicated region
    $region26: #{linear_forward.1} parent=1 // pred_check
      _
    $region27: #{linear_forward.1} parent=1 // pred_check_branch
      %134 = sbr.rel (0) target = $region29
    $region28: #{linear_forward.1} parent=1 // pred_region
      %135 = dma.done [#allocation3], 128
    $region29: #{linear_forward.1} parent=1 // pred_fallthru
      _
    %136 = vsyncpa [#allocation3], 1

</llo_original>
